<compile_context>
chip_gen: v7x
topology: tpu7x:2x2x1
jax: 0.10.0
libtpu: 0.0.40
codegen_flags: <defaults>
</compile_context>

<pallas_src>
import jax
import jax.numpy as jnp
from jax import lax
from jax.experimental import pallas as pl
from jax.experimental.pallas import tpu as pltpu


# ----------------------------------------------------------------------------
# Fused encoder + interaction kernel (single grid step, fully 2-D).
# ----------------------------------------------------------------------------
def _fused_kernel(sizes_ref, x_ref, adj_ref, w1_ref, w2_ref, b_ref,
                  wint_ref, bias_ref, out_ref):
    GN, D = x_ref.shape
    N = adj_ref.shape[1]
    G = GN // N
    H = w1_ref.shape[1]
    B = out_ref.shape[0]

    # (1) node transforms: two lane-aligned matmuls (MXU), no lane slicing.
    x = x_ref[...]
    xw1 = jnp.dot(x, w1_ref[...], preferred_element_type=jnp.float32)    # (GN, H)
    xw2 = jnp.dot(x, w2_ref[...], preferred_element_type=jnp.float32)    # (GN, H)

    # (2) message passing as ONE block-diagonal matmul.
    #     tiled[r, c] = adj[r, c mod N] via a constant 0/1 selector on the MXU
    #     (cheaper than an unaligned lane concat), then zero off-diagonal
    #     graph blocks with a division-free r//N == c//N mask.
    adj = adj_ref[...]                                                    # (GN, N)
    m_io = lax.broadcasted_iota(jnp.int32, (N, GN), 0)
    cq_io = lax.broadcasted_iota(jnp.int32, (N, GN), 1)
    q_sel = jnp.zeros((N, GN), jnp.float32)
    for g in range(G):                                                    # unrolled at trace time
        q_sel = q_sel + jnp.where(cq_io == m_io + g * N, 1.0, 0.0)
    tiled = jnp.dot(adj, q_sel, preferred_element_type=jnp.float32)       # (GN, GN)

    r_io = lax.broadcasted_iota(jnp.int32, (GN, 1), 0)
    c_io = lax.broadcasted_iota(jnp.int32, (1, GN), 1)
    r_blk = jnp.zeros((GN, 1), jnp.int32)
    c_blk = jnp.zeros((1, GN), jnp.int32)
    for g in range(1, G):                                                 # step-sum == floor-div by N
        r_blk = r_blk + (r_io >= g * N).astype(jnp.int32)
        c_blk = c_blk + (c_io >= g * N).astype(jnp.int32)
    a_bd = jnp.where(r_blk == c_blk, tiled, 0.0)                          # (GN, GN) block-diagonal
    msg = jnp.dot(a_bd, xw1, preferred_element_type=jnp.float32)          # (GN, H)

    # (3) node update (VPU, f32)
    h = jnp.maximum(msg + xw2 + b_ref[...], 0.0)                          # (GN, H)

    # (4) size-masked sum pooling as ONE (G, GN) @ (GN, H) matmul (MXU, not XLU)
    row_g = lax.broadcasted_iota(jnp.int32, (G, GN), 0)
    col_j = lax.broadcasted_iota(jnp.int32, (G, GN), 1)
    start = row_g * N
    pool = jnp.where((col_j >= start) & (col_j < start + sizes_ref[...]),
                     1.0, 0.0)                                            # (G, GN)
    emb = jnp.dot(pool, h, preferred_element_type=jnp.float32)            # (G, H)

    # (5) interaction: s_b = sum_h w_h * q_{b,h} * c_{b,h} + bias
    #     VPU multiply + lane reduce (no MXU pass wasted on an M=1 matmul).
    q = emb[:B]                                                           # (B, H)
    c = emb[B:]                                                           # (B, H)
    s = jnp.sum(q * c * wint_ref[...], axis=-1, keepdims=True)            # (B, 1)
    out_ref[...] = s + bias_ref[0, 0]


# ----------------------------------------------------------------------------
# Wrapper: free reshapes only + single fused pallas_call.
# ----------------------------------------------------------------------------
def encode_then_interact_forward(graphs, graph_sizes, graph_adj_matrices, params):
    G, N, D = graphs.shape
    assert G % 2 == 0, "graphs must be packed as [queries; corpus] with G = 2B"
    B = G // 2
    H = params["w1"].shape[1]
    GN = G * N

    # layout-preserving reshapes only (free bitcasts under jit) — no per-forward math
    x2d = graphs.reshape(GN, D)
    adj2d = graph_adj_matrices.reshape(GN, N)          # row g*N+n holds A[g, n, :]
    sizes2d = graph_sizes.astype(jnp.int32).reshape(G, 1)

    flops = (2 * 2 * GN * D * H        # X @ W1, X @ W2
             + 2 * GN * N * GN         # lane-replication selector matmul
             + 2 * GN * GN * H         # block-diagonal message passing
             + 2 * G * GN * H          # pooling matmul
             + 6 * B * H)              # interaction
    bytes_accessed = 4 * (GN * D + GN * N + 2 * D * H + 2 * H + G + 1 + B)
    cost = pl.CostEstimate(flops=flops, transcendentals=0,
                           bytes_accessed=bytes_accessed)

    scores = pl.pallas_call(
        _fused_kernel,
        out_shape=jax.ShapeDtypeStruct((B, 1), jnp.float32),
        grid=(1,),
        in_specs=[
            pl.BlockSpec((G, 1), lambda i: (0, 0)),             # graph sizes (int32)
            pl.BlockSpec((GN, D), lambda i: (0, 0)),            # node features, flattened
            pl.BlockSpec((GN, N), lambda i: (0, 0)),            # adjacency, stacked (f32)
            pl.BlockSpec((D, H), lambda i: (0, 0)),             # W1
            pl.BlockSpec((D, H), lambda i: (0, 0)),             # W2
            pl.BlockSpec((1, H), lambda i: (0, 0)),             # bias b
            pl.BlockSpec((1, H), lambda i: (0, 0)),             # interaction weights
            pl.BlockSpec(memory_space=pltpu.MemorySpace.SMEM),  # interaction bias scalar
        ],
        out_specs=pl.BlockSpec((B, 1), lambda i: (0, 0)),
        compiler_params=pltpu.CompilerParams(
            dimension_semantics=("arbitrary",)),
        cost_estimate=cost,
    )(sizes2d, x2d, adj2d, params["w1"], params["w2"], params["b"],
      params["w_int"], params["bias_int"])

    return scores.reshape(B)      # (B,)


# ----------------------------------------------------------------------------
# Reference (pure JAX) for sanity checking.
# ----------------------------------------------------------------------------
def _reference_forward(graphs, graph_sizes, adj, params):
    msg = jnp.einsum("gnm,gmd->gnd", adj, graphs)
    h = jax.nn.relu(msg @ params["w1"] + graphs @ params["w2"] + params["b"])
    node_ids = jnp.arange(graphs.shape[1])[None, :, None]
    mask = (node_ids < graph_sizes[:, None, None]).astype(jnp.float32)
    emb = jnp.sum(h * mask, axis=1)
    B = graphs.shape[0] // 2
    q, c = emb[:B], emb[B:]
    return jnp.sum(q * c * params["w_int"], axis=-1) + params["bias_int"][0, 0]


if __name__ == "__main__":
    B, N, D, H = 2, 16, 32, 32       # B query/corpus pairs, N nodes, D feats, H hidden
    G = 2 * B

    key = jax.random.PRNGKey(0)
    k_x, k_a, k_w1, k_w2, k_b, k_wi = jax.random.split(key, 6)

    # node features (queries first, then corpus graphs)
    graphs = jax.random.normal(k_x, (G, N, D), dtype=jnp.float32)

    # symmetric 0/1 adjacency matrices, no self loops
    a_raw = (jax.random.uniform(k_a, (G, N, N)) < 0.3).astype(jnp.float32)
    adj = jnp.clip(a_raw + jnp.swapaxes(a_raw, 1, 2), 0.0, 1.0)
    adj = adj * (1.0 - jnp.eye(N, dtype=jnp.float32)[None])

    # actual graph sizes (padded to N nodes)
    graph_sizes = jnp.array([16, 12, 14, 10], dtype=jnp.int32)

    # deterministic parameters
    params = {
        "w1": jax.random.normal(k_w1, (D, H), dtype=jnp.float32) * 0.1,
        "w2": jax.random.normal(k_w2, (D, H), dtype=jnp.float32) * 0.1,
        "b": jax.random.normal(k_b, (1, H), dtype=jnp.float32) * 0.01,
        "w_int": jax.random.normal(k_wi, (1, H), dtype=jnp.float32) * 0.1,
        "bias_int": jnp.full((1, 1), 0.05, dtype=jnp.float32),
    }

    forward = jax.jit(encode_then_interact_forward)
    scores = forward(graphs, graph_sizes, adj, params)
    scores = jax.block_until_ready(scores)

    ref = _reference_forward(graphs, graph_sizes, adj, params)
    assert scores.shape == (B,)
    assert jnp.allclose(scores, ref, rtol=1e-4, atol=1e-4), (scores, ref)

    print("KERNEL_OK")
</pallas_src>

<mosaic_0001>
module attributes {stable_mosaic.version = 11 : i64} {
  func.func @_fused_kernel(%arg0: i32, %arg1: memref<4x1xi32, #tpu.memory_space<vmem>>, %arg2: memref<64x32xf32, #tpu.memory_space<vmem>>, %arg3: memref<64x16xf32, #tpu.memory_space<vmem>>, %arg4: memref<32x32xf32, #tpu.memory_space<vmem>>, %arg5: memref<32x32xf32, #tpu.memory_space<vmem>>, %arg6: memref<1x32xf32, #tpu.memory_space<vmem>>, %arg7: memref<1x32xf32, #tpu.memory_space<vmem>>, %arg8: memref<1x1xf32, #tpu.memory_space<smem>>, %arg9: memref<2x1xf32, #tpu.memory_space<vmem>>) attributes {dimension_semantics = [#tpu.dimension_semantics<arbitrary>], iteration_bounds = array<i64: 1>, scalar_prefetch = 0 : i64, scratch_operands = 0 : i64, tpu.core_type = #tpu.core_type<tc>, window_params = [{pipeline_mode = #tpu.pipeline_mode<synchronous>, transform_indices = @transform_0, window_bounds = array<i64: 4, 1>}, {pipeline_mode = #tpu.pipeline_mode<synchronous>, transform_indices = @transform_1, window_bounds = array<i64: 64, 32>}, {pipeline_mode = #tpu.pipeline_mode<synchronous>, transform_indices = @transform_2, window_bounds = array<i64: 64, 16>}, {pipeline_mode = #tpu.pipeline_mode<synchronous>, transform_indices = @transform_3, window_bounds = array<i64: 32, 32>}, {pipeline_mode = #tpu.pipeline_mode<synchronous>, transform_indices = @transform_4, window_bounds = array<i64: 32, 32>}, {pipeline_mode = #tpu.pipeline_mode<synchronous>, transform_indices = @transform_5, window_bounds = array<i64: 1, 32>}, {pipeline_mode = #tpu.pipeline_mode<synchronous>, transform_indices = @transform_6, window_bounds = array<i64: 1, 32>}, {transform_indices = @transform_7, window_bounds = array<i64: 1, 1>}, {pipeline_mode = #tpu.pipeline_mode<synchronous>, transform_indices = @transform_8, window_bounds = array<i64: 2, 1>}]} {
    %c0 = arith.constant 0 : index
    %c0_0 = arith.constant 0 : index
    %0 = vector.load %arg2[%c0, %c0_0] : memref<64x32xf32, #tpu.memory_space<vmem>>, vector<64x32xf32>
    %c0_1 = arith.constant 0 : index
    %c0_2 = arith.constant 0 : index
    %1 = vector.load %arg4[%c0_1, %c0_2] : memref<32x32xf32, #tpu.memory_space<vmem>>, vector<32x32xf32>
    %cst = arith.constant dense<0.000000e+00> : vector<64x32xf32>
    %2 = tpu.matmul %0, %1, %cst {dimension_numbers = #tpu.dot_dimension_numbers<[1], [0], [0], [1], [0, 0, 1, 1], [], []>} : vector<64x32xf32>, vector<32x32xf32>, vector<64x32xf32> -> vector<64x32xf32>
    %c0_3 = arith.constant 0 : index
    %c0_4 = arith.constant 0 : index
    %3 = vector.load %arg5[%c0_3, %c0_4] : memref<32x32xf32, #tpu.memory_space<vmem>>, vector<32x32xf32>
    %cst_5 = arith.constant dense<0.000000e+00> : vector<64x32xf32>
    %4 = tpu.matmul %0, %3, %cst_5 {dimension_numbers = #tpu.dot_dimension_numbers<[1], [0], [0], [1], [0, 0, 1, 1], [], []>} : vector<64x32xf32>, vector<32x32xf32>, vector<64x32xf32> -> vector<64x32xf32>
    %c0_6 = arith.constant 0 : index
    %c0_7 = arith.constant 0 : index
    %5 = vector.load %arg3[%c0_6, %c0_7] : memref<64x16xf32, #tpu.memory_space<vmem>>, vector<64x16xf32>
    %6 = tpu.iota {dimensions = array<i32: 0>} : vector<16x64xi32>
    %7 = tpu.iota {dimensions = array<i32: 1>} : vector<16x64xi32>
    %cst_8 = arith.constant 0.000000e+00 : f32
    %8 = vector.broadcast %cst_8 : f32 to vector<16x64xf32>
    %c0_i32 = arith.constant 0 : i32
    %9 = vector.broadcast %c0_i32 : i32 to vector<16x64xi32>
    %10 = arith.addi %6, %9 : vector<16x64xi32>
    %11 = arith.cmpi eq, %7, %10 : vector<16x64xi32>
    %cst_9 = arith.constant 1.000000e+00 : f32
    %cst_10 = arith.constant 0.000000e+00 : f32
    %12 = vector.broadcast %cst_9 : f32 to vector<16x64xf32>
    %13 = vector.broadcast %cst_10 : f32 to vector<16x64xf32>
    %14 = arith.select %11, %12, %13 : vector<16x64xi1>, vector<16x64xf32>
    %15 = arith.addf %8, %14 : vector<16x64xf32>
    %c16_i32 = arith.constant 16 : i32
    %16 = vector.broadcast %c16_i32 : i32 to vector<16x64xi32>
    %17 = arith.addi %6, %16 : vector<16x64xi32>
    %18 = arith.cmpi eq, %7, %17 : vector<16x64xi32>
    %cst_11 = arith.constant 1.000000e+00 : f32
    %cst_12 = arith.constant 0.000000e+00 : f32
    %19 = vector.broadcast %cst_11 : f32 to vector<16x64xf32>
    %20 = vector.broadcast %cst_12 : f32 to vector<16x64xf32>
    %21 = arith.select %18, %19, %20 : vector<16x64xi1>, vector<16x64xf32>
    %22 = arith.addf %15, %21 : vector<16x64xf32>
    %c32_i32 = arith.constant 32 : i32
    %23 = vector.broadcast %c32_i32 : i32 to vector<16x64xi32>
    %24 = arith.addi %6, %23 : vector<16x64xi32>
    %25 = arith.cmpi eq, %7, %24 : vector<16x64xi32>
    %cst_13 = arith.constant 1.000000e+00 : f32
    %cst_14 = arith.constant 0.000000e+00 : f32
    %26 = vector.broadcast %cst_13 : f32 to vector<16x64xf32>
    %27 = vector.broadcast %cst_14 : f32 to vector<16x64xf32>
    %28 = arith.select %25, %26, %27 : vector<16x64xi1>, vector<16x64xf32>
    %29 = arith.addf %22, %28 : vector<16x64xf32>
    %c48_i32 = arith.constant 48 : i32
    %30 = vector.broadcast %c48_i32 : i32 to vector<16x64xi32>
    %31 = arith.addi %6, %30 : vector<16x64xi32>
    %32 = arith.cmpi eq, %7, %31 : vector<16x64xi32>
    %cst_15 = arith.constant 1.000000e+00 : f32
    %cst_16 = arith.constant 0.000000e+00 : f32
    %33 = vector.broadcast %cst_15 : f32 to vector<16x64xf32>
    %34 = vector.broadcast %cst_16 : f32 to vector<16x64xf32>
    %35 = arith.select %32, %33, %34 : vector<16x64xi1>, vector<16x64xf32>
    %36 = arith.addf %29, %35 : vector<16x64xf32>
    %cst_17 = arith.constant dense<0.000000e+00> : vector<64x64xf32>
    %37 = tpu.matmul %5, %36, %cst_17 {dimension_numbers = #tpu.dot_dimension_numbers<[1], [0], [0], [1], [0, 0, 1, 1], [], []>} : vector<64x16xf32>, vector<16x64xf32>, vector<64x64xf32> -> vector<64x64xf32>
    %38 = tpu.iota {dimensions = array<i32: 0>} : vector<64x1xi32>
    %39 = tpu.iota {dimensions = array<i32: 1>} : vector<1x64xi32>
    %c0_i32_18 = arith.constant 0 : i32
    %40 = vector.broadcast %c0_i32_18 : i32 to vector<64x1xi32>
    %c0_i32_19 = arith.constant 0 : i32
    %41 = vector.broadcast %c0_i32_19 : i32 to vector<1x64xi32>
    %c16_i32_20 = arith.constant 16 : i32
    %42 = vector.broadcast %c16_i32_20 : i32 to vector<64x1xi32>
    %43 = arith.cmpi sge, %38, %42 : vector<64x1xi32>
    %44 = arith.extui %43 : vector<64x1xi1> to vector<64x1xi32>
    %45 = arith.addi %40, %44 : vector<64x1xi32>
    %c16_i32_21 = arith.constant 16 : i32
    %46 = vector.broadcast %c16_i32_21 : i32 to vector<1x64xi32>
    %47 = arith.cmpi sge, %39, %46 : vector<1x64xi32>
    %48 = arith.extui %47 : vector<1x64xi1> to vector<1x64xi32>
    %49 = arith.addi %41, %48 : vector<1x64xi32>
    %c32_i32_22 = arith.constant 32 : i32
    %50 = vector.broadcast %c32_i32_22 : i32 to vector<64x1xi32>
    %51 = arith.cmpi sge, %38, %50 : vector<64x1xi32>
    %52 = arith.extui %51 : vector<64x1xi1> to vector<64x1xi32>
    %53 = arith.addi %45, %52 : vector<64x1xi32>
    %c32_i32_23 = arith.constant 32 : i32
    %54 = vector.broadcast %c32_i32_23 : i32 to vector<1x64xi32>
    %55 = arith.cmpi sge, %39, %54 : vector<1x64xi32>
    %56 = arith.extui %55 : vector<1x64xi1> to vector<1x64xi32>
    %57 = arith.addi %49, %56 : vector<1x64xi32>
    %c48_i32_24 = arith.constant 48 : i32
    %58 = vector.broadcast %c48_i32_24 : i32 to vector<64x1xi32>
    %59 = arith.cmpi sge, %38, %58 : vector<64x1xi32>
    %60 = arith.extui %59 : vector<64x1xi1> to vector<64x1xi32>
    %61 = arith.addi %53, %60 : vector<64x1xi32>
    %c48_i32_25 = arith.constant 48 : i32
    %62 = vector.broadcast %c48_i32_25 : i32 to vector<1x64xi32>
    %63 = arith.cmpi sge, %39, %62 : vector<1x64xi32>
    %64 = arith.extui %63 : vector<1x64xi1> to vector<1x64xi32>
    %65 = arith.addi %57, %64 : vector<1x64xi32>
    %66 = vector.broadcast %61 : vector<64x1xi32> to vector<64x64xi32>
    %67 = vector.broadcast %65 : vector<1x64xi32> to vector<64x64xi32>
    %68 = arith.cmpi eq, %66, %67 : vector<64x64xi32>
    %cst_26 = arith.constant 0.000000e+00 : f32
    %69 = vector.broadcast %cst_26 : f32 to vector<64x64xf32>
    %70 = arith.select %68, %37, %69 : vector<64x64xi1>, vector<64x64xf32>
    %cst_27 = arith.constant dense<0.000000e+00> : vector<64x32xf32>
    %71 = tpu.matmul %70, %2, %cst_27 {dimension_numbers = #tpu.dot_dimension_numbers<[1], [0], [0], [1], [0, 0, 1, 1], [], []>} : vector<64x64xf32>, vector<64x32xf32>, vector<64x32xf32> -> vector<64x32xf32>
    %72 = arith.addf %71, %4 : vector<64x32xf32>
    %c0_28 = arith.constant 0 : index
    %c0_29 = arith.constant 0 : index
    %73 = vector.load %arg6[%c0_28, %c0_29] : memref<1x32xf32, #tpu.memory_space<vmem>>, vector<1x32xf32>
    %74 = vector.broadcast %73 : vector<1x32xf32> to vector<64x32xf32>
    %75 = arith.addf %72, %74 : vector<64x32xf32>
    %cst_30 = arith.constant 0.000000e+00 : f32
    %76 = vector.broadcast %cst_30 : f32 to vector<64x32xf32>
    %77 = arith.maximumf %75, %76 : vector<64x32xf32>
    %78 = tpu.iota {dimensions = array<i32: 0>} : vector<4x64xi32>
    %79 = tpu.iota {dimensions = array<i32: 1>} : vector<4x64xi32>
    %c16_i32_31 = arith.constant 16 : i32
    %80 = vector.broadcast %c16_i32_31 : i32 to vector<4x64xi32>
    %81 = arith.muli %78, %80 : vector<4x64xi32>
    %82 = arith.cmpi sge, %79, %81 : vector<4x64xi32>
    %c0_32 = arith.constant 0 : index
    %c0_33 = arith.constant 0 : index
    %83 = vector.load %arg1[%c0_32, %c0_33] : memref<4x1xi32, #tpu.memory_space<vmem>>, vector<4x1xi32>
    %84 = vector.broadcast %83 : vector<4x1xi32> to vector<4x64xi32>
    %85 = arith.addi %81, %84 : vector<4x64xi32>
    %86 = arith.cmpi slt, %79, %85 : vector<4x64xi32>
    %87 = arith.andi %82, %86 : vector<4x64xi1>
    %cst_34 = arith.constant 1.000000e+00 : f32
    %cst_35 = arith.constant 0.000000e+00 : f32
    %88 = vector.broadcast %cst_34 : f32 to vector<4x64xf32>
    %89 = vector.broadcast %cst_35 : f32 to vector<4x64xf32>
    %90 = arith.select %87, %88, %89 : vector<4x64xi1>, vector<4x64xf32>
    %cst_36 = arith.constant dense<0.000000e+00> : vector<4x32xf32>
    %91 = tpu.matmul %90, %77, %cst_36 {dimension_numbers = #tpu.dot_dimension_numbers<[1], [0], [0], [1], [0, 0, 1, 1], [], []>} : vector<4x64xf32>, vector<64x32xf32>, vector<4x32xf32> -> vector<4x32xf32>
    %92 = vector.extract_strided_slice %91 {offsets = [0, 0], sizes = [2, 32], strides = [1, 1]} : vector<4x32xf32> to vector<2x32xf32>
    %93 = vector.extract_strided_slice %91 {offsets = [2, 0], sizes = [2, 32], strides = [1, 1]} : vector<4x32xf32> to vector<2x32xf32>
    %94 = arith.mulf %92, %93 : vector<2x32xf32>
    %c0_37 = arith.constant 0 : index
    %c0_38 = arith.constant 0 : index
    %95 = vector.load %arg7[%c0_37, %c0_38] : memref<1x32xf32, #tpu.memory_space<vmem>>, vector<1x32xf32>
    %96 = vector.broadcast %95 : vector<1x32xf32> to vector<2x32xf32>
    %97 = arith.mulf %94, %96 : vector<2x32xf32>
    %cst_39 = arith.constant dense<0.000000e+00> : vector<2xf32>
    %98 = vector.multi_reduction <add>, %97, %cst_39 [1] : vector<2x32xf32> to vector<2xf32>
    %99 = vector.shape_cast %98 : vector<2xf32> to vector<2x1xf32>
    %c0_40 = arith.constant 0 : index
    %c0_41 = arith.constant 0 : index
    %100 = memref.load %arg8[%c0_40, %c0_41] : memref<1x1xf32, #tpu.memory_space<smem>>
    %101 = vector.broadcast %100 : f32 to vector<2x1xf32>
    %102 = arith.addf %99, %101 : vector<2x1xf32>
    %c0_42 = arith.constant 0 : index
    %c0_43 = arith.constant 0 : index
    %103 = vector.load %arg9[%c0_42, %c0_43] : memref<2x1xf32, #tpu.memory_space<vmem>>, vector<2x1xf32>
    tpu.vector_store %arg9[%c0_42, %c0_43], %102 {strides = array<i32>} : memref<2x1xf32, #tpu.memory_space<vmem>>, vector<2x1xf32>,
    return
  }
  func.func @transform_0(%arg0: i32) -> (i32, i32) {
    %c0_i32 = arith.constant 0 : i32
    %c0_i32_0 = arith.constant 0 : i32
    %c0_i32_1 = arith.constant 0 : i32
    return %c0_i32, %c0_i32_0 : i32, i32
  }
  func.func @transform_1(%arg0: i32) -> (i32, i32) {
    %c0_i32 = arith.constant 0 : i32
    %c0_i32_0 = arith.constant 0 : i32
    %c0_i32_1 = arith.constant 0 : i32
    return %c0_i32, %c0_i32_0 : i32, i32
  }
  func.func @transform_2(%arg0: i32) -> (i32, i32) {
    %c0_i32 = arith.constant 0 : i32
    %c0_i32_0 = arith.constant 0 : i32
    %c0_i32_1 = arith.constant 0 : i32
    return %c0_i32, %c0_i32_0 : i32, i32
  }
  func.func @transform_3(%arg0: i32) -> (i32, i32) {
    %c0_i32 = arith.constant 0 : i32
    %c0_i32_0 = arith.constant 0 : i32
    %c0_i32_1 = arith.constant 0 : i32
    return %c0_i32, %c0_i32_0 : i32, i32
  }
  func.func @transform_4(%arg0: i32) -> (i32, i32) {
    %c0_i32 = arith.constant 0 : i32
    %c0_i32_0 = arith.constant 0 : i32
    %c0_i32_1 = arith.constant 0 : i32
    return %c0_i32, %c0_i32_0 : i32, i32
  }
  func.func @transform_5(%arg0: i32) -> (i32, i32) {
    %c0_i32 = arith.constant 0 : i32
    %c0_i32_0 = arith.constant 0 : i32
    %c0_i32_1 = arith.constant 0 : i32
    return %c0_i32, %c0_i32_0 : i32, i32
  }
  func.func @transform_6(%arg0: i32) -> (i32, i32) {
    %c0_i32 = arith.constant 0 : i32
    %c0_i32_0 = arith.constant 0 : i32
    %c0_i32_1 = arith.constant 0 : i32
    return %c0_i32, %c0_i32_0 : i32, i32
  }
  func.func @transform_7(%arg0: i32) -> (i32, i32) {
    %c0_i32 = arith.constant 0 : i32
    %c0_i32_0 = arith.constant 0 : i32
    %c0_i32_1 = arith.constant 0 : i32
    return %c0_i32, %c0_i32_0 : i32, i32
  }
  func.func @transform_8(%arg0: i32) -> (i32, i32) {
    %c0_i32 = arith.constant 0 : i32
    %c0_i32_0 = arith.constant 0 : i32
    %c0_i32_1 = arith.constant 0 : i32
    return %c0_i32, %c0_i32_0 : i32, i32
  }
}

</mosaic_0001>

<llo_original>
// kernel: encode_then_interact_forward.1
$region0: #{encode_then_interact_forward.1}
  #allocation0 [shape = 'u32[]', space=smem, size = 0x4, offset = 0x4, fixed_abs, tag = 'smem constant byte address 0x4 - core index']
  #allocation1 [shape = 'u32[144,128]{1,0:T(1,128)}', space=vmem, size = 0x12000, scoped, tag = 'internal scratch']
  #allocation2 [shape = 'f32[1,1]{1,0:T(1,128)S(6)}', space=smem, size = 0x200, scoped, tag = 'scoped memory for encode_then_interact_forward.1']
  %s0 = inlined_call_operand.vmem [shape: s32[4,1], index: 0, kind: input, shape index: {}]
  %s1 = inlined_call_operand.hbm [shape: f32[64,32], index: 1, kind: input, shape index: {}]
  %s2 = inlined_call_operand.hbm [shape: f32[64,16], index: 2, kind: input, shape index: {}]
  %s3 = inlined_call_operand.vmem [shape: f32[32,32], index: 3, kind: input, shape index: {}]
  %s4 = inlined_call_operand.hbm [shape: f32[32,32], index: 4, kind: input, shape index: {}]
  %s5 = inlined_call_operand.vmem [shape: f32[1,32], index: 5, kind: input, shape index: {}]
  %s6 = inlined_call_operand.vmem [shape: f32[1,32], index: 6, kind: input, shape index: {}]
  %s7 = inlined_call_operand.<no memory space> [shape: f32[1,1], index: 7, kind: input, shape index: {}]
  %s8 = inlined_call_operand.vmem [shape: f32[2,1], index: 8, kind: output, shape index: {}]
  %s9 = sld [smem:[#allocation0]]
  $region54: #{encode_then_interact_forward.1} parent=0
    _
  %s11 = ssub.s32 1, %s9
  %s12 = scalar_select 0, %s11, %s9
  %13 = sst [smem:[#allocation2]] %s7
  $region1: #{encode_then_interact_forward.1} parent=0
    #allocation3 [shape = 'u8[32768]{0}', space=vmem, size = 0x8000, scoped, tag = 'input window, operand 1, single buffered']
    #allocation4 [shape = 's32[1]{0}', space=sflag, size = 0x4, scoped, tag = 'scoped memory for encode_then_interact_forward.1']
    #allocation5 [shape = 'u8[32768]{0}', space=vmem, size = 0x8000, scoped, tag = 'input window, operand 2, single buffered']
    #allocation6 [shape = 's32[1]{0}', space=sflag, size = 0x4, scoped, tag = 'scoped memory for encode_then_interact_forward.1']
    #allocation7 [shape = 'u8[16384]{0}', space=vmem, size = 0x4000, scoped, tag = 'input window, operand 4, single buffered']
    %14 = vsyncpa [#allocation4], 0
    %15 = vsyncpa [#allocation6], 0
    // Predicated region
    $region2: #{encode_then_interact_forward.1} parent=1 // pred_check
      _
    $region3: #{encode_then_interact_forward.1} parent=1 // pred_check_branch
      %17 = sbr.rel (0) target = $region5
    $region4: #{encode_then_interact_forward.1} parent=1 // pred_region
      _
    $region5: #{encode_then_interact_forward.1} parent=1 // pred_fallthru
      _
    // Predicated region
    $region6: #{encode_then_interact_forward.1} parent=1 // pred_check
      _
    $region7: #{encode_then_interact_forward.1} parent=1 // pred_check_branch
      %19 = sbr.rel (0) target = $region9
    $region8: #{encode_then_interact_forward.1} parent=1 // pred_region
      %s21 = ssub.s32 1024, 1024
      %22 = vsyncadd [#allocation4], %s21
      %s23 = sshll.u32 [#allocation3], 4
      %s24 = int_to_ptr.vmem [resolvable:$true] %s23
      %29 = dma.hbm_to_vmem [thread:$0]  %s1, 1024, %s24, [#allocation4], 128, 128, 8
    $region9: #{encode_then_interact_forward.1} parent=1 // pred_fallthru
      _
    // Predicated region
    $region10: #{encode_then_interact_forward.1} parent=1 // pred_check
      _
    $region11: #{encode_then_interact_forward.1} parent=1 // pred_check_branch
      %31 = sbr.rel (0) target = $region13
    $region12: #{encode_then_interact_forward.1} parent=1 // pred_region
      %s33 = ssub.s32 1024, 1024
      %34 = vsyncadd [#allocation6], %s33
      %s35 = sshll.u32 [#allocation5], 4
      %s36 = int_to_ptr.vmem [resolvable:$true] %s35
      %41 = dma.hbm_to_vmem [thread:$0]  %s2, 1024, %s36, [#allocation6], 128, 128, 8
    $region13: #{encode_then_interact_forward.1} parent=1 // pred_fallthru
      _
    // Predicated region
    $region14: #{encode_then_interact_forward.1} parent=1 // pred_check
      _
    $region15: #{encode_then_interact_forward.1} parent=1 // pred_check_branch
      %43 = sbr.rel (0) target = $region17
    $region16: #{encode_then_interact_forward.1} parent=1 // pred_region
      _
    $region17: #{encode_then_interact_forward.1} parent=1 // pred_fallthru
      _
    // Predicated region
    $region18: #{encode_then_interact_forward.1} parent=1 // pred_check
      _
    $region19: #{encode_then_interact_forward.1} parent=1 // pred_check_branch
      %45 = sbr.rel (0) target = $region21
    $region20: #{encode_then_interact_forward.1} parent=1 // pred_region
      %s47 = ssub.s32 512, 512
      %48 = vsyncadd [#allocation6], %s47
      %s49 = sshll.u32 [#allocation7], 4
      %s50 = int_to_ptr.vmem [resolvable:$true] %s49
      %55 = dma.hbm_to_vmem [thread:$0]  %s4, 512, %s50, [#allocation6], 128, 128, 8
    $region21: #{encode_then_interact_forward.1} parent=1 // pred_fallthru
      _
    // Predicated region
    $region22: #{encode_then_interact_forward.1} parent=1 // pred_check
      _
    $region23: #{encode_then_interact_forward.1} parent=1 // pred_check_branch
      %57 = sbr.rel (0) target = $region25
    $region24: #{encode_then_interact_forward.1} parent=1 // pred_region
      _
    $region25: #{encode_then_interact_forward.1} parent=1 // pred_fallthru
      _
    // Predicated region
    $region26: #{encode_then_interact_forward.1} parent=1 // pred_check
      _
    $region27: #{encode_then_interact_forward.1} parent=1 // pred_check_branch
      %59 = sbr.rel (0) target = $region29
    $region28: #{encode_then_interact_forward.1} parent=1 // pred_region
      _
    $region29: #{encode_then_interact_forward.1} parent=1 // pred_fallthru
      _
    // Predicated region
    $region30: #{encode_then_interact_forward.1} parent=1 // pred_check
      _
    $region31: #{encode_then_interact_forward.1} parent=1 // pred_check_branch
      %61 = sbr.rel (0) target = $region33
    $region32: #{encode_then_interact_forward.1} parent=1 // pred_region
      _
    $region33: #{encode_then_interact_forward.1} parent=1 // pred_fallthru
      _
    // Predicated region
    $region34: #{encode_then_interact_forward.1} parent=1 // pred_check
      _
    $region35: #{encode_then_interact_forward.1} parent=1 // pred_check_branch
      %63 = sbr.rel (0) target = $region37
    $region36: #{encode_then_interact_forward.1} parent=1 // pred_region
      %64 = dma.done [#allocation4], 1024
    $region37: #{encode_then_interact_forward.1} parent=1 // pred_fallthru
      _
    // Predicated region
    $region38: #{encode_then_interact_forward.1} parent=1 // pred_check
      _
    $region39: #{encode_then_interact_forward.1} parent=1 // pred_check_branch
      %66 = sbr.rel (0) target = $region41
    $region40: #{encode_then_interact_forward.1} parent=1 // pred_region
      %67 = dma.done [#allocation6], 1024
    $region41: #{encode_then_interact_forward.1} parent=1 // pred_fallthru
      _
    // Predicated region
    $region42: #{encode_then_interact_forward.1} parent=1 // pred_check
      _
    $region43: #{encode_then_interact_forward.1} parent=1 // pred_check_branch
      %69 = sbr.rel (0) target = $region45
    $region44: #{encode_then_interact_forward.1} parent=1 // pred_region
      %70 = dma.done [#allocation6], 512
    $region45: #{encode_then_interact_forward.1} parent=1 // pred_fallthru
      _
    %v71 = vld [vmem:[#allocation3] sm:$0xff]
    %v72 = vld [vmem:[#allocation3 + $0x8] sm:$0xff]
    %v73 = vld [vmem:[#allocation3 + $0x10] sm:$0xff]
    %v74 = vld [vmem:[#allocation3 + $0x18] sm:$0xff]
    %v75 = vld [vmem:[#allocation3 + $0x20] sm:$0xff]
    %v76 = vld [vmem:[#allocation3 + $0x28] sm:$0xff]
    %v77 = vld [vmem:[#allocation3 + $0x30] sm:$0xff]
    %v78 = vld [vmem:[#allocation3 + $0x38] sm:$0xff]
    %v79 = vld [vmem:[%s3] sm:$0xff]
    %v80 = vld [vmem:[%s3 + $0x8] sm:$0xff]
    %v81 = vld [vmem:[%s3 + $0x10] sm:$0xff]
    %v82 = vld [vmem:[%s3 + $0x18] sm:$0xff]
    %vm83 = vcmask 261120
    %v85 = vsel %vm83, %v71, 0
    %v88 = vsel %vm83, %v72, 0
    %v91 = vsel %vm83, %v73, 0
    %v94 = vsel %vm83, %v74, 0
    %v97 = vsel %vm83, %v75, 0
    %v100 = vsel %vm83, %v76, 0
    %v103 = vsel %vm83, %v77, 0
    %v106 = vsel %vm83, %v78, 0
    %108 = vmatprep.subr.mxu0 0.0
    %109 = vmatpush1.msra.mxu0 %v79
    %110 = vmatprep.subr.mxu0 0.0
    %111 = vmatpush1.msra.mxu0 %v80
    %112 = vmatprep.subr.mxu0 0.0
    %113 = vmatpush1.msra.mxu0 %v81
    %114 = vmatprep.subr.mxu0 0.0
    %115 = vmatpush1.msra.mxu0 %v82
    %116 = vmatprep.subr.mxu0 0.0
    %117 = vmatpush1.msra.mxu0 0.0
    %118 = vmatprep.subr.mxu0 0.0
    %119 = vmatpush1.msra.mxu0 0.0
    %120 = vmatprep.subr.mxu0 0.0
    %121 = vmatpush1.msra.mxu0 0.0
    %122 = vmatprep.subr.mxu0 0.0
    %123 = vmatpush1.msra.mxu0 0.0
    %124 = vmatprep.subr.mxu0 0.0
    %125 = vmatpush1.msra.mxu0 0.0
    %126 = vmatprep.subr.mxu0 0.0
    %127 = vmatpush1.msra.mxu0 0.0
    %128 = vmatprep.subr.mxu0 0.0
    %129 = vmatpush1.msra.mxu0 0.0
    %130 = vmatprep.subr.mxu0 0.0
    %131 = vmatpush1.msra.mxu0 0.0
    %132 = vmatprep.subr.mxu0 0.0
    %133 = vmatpush1.msra.mxu0 0.0
    %134 = vmatprep.subr.mxu0 0.0
    %135 = vmatpush1.msra.mxu0 0.0
    %136 = vmatprep.subr.mxu0 0.0
    %137 = vmatpush1.msra.mxu0 0.0
    %138 = vmatprep.subr.mxu0 0.0
    %139 = vmatpush1.msra.mxu0 0.0
    %140 = vmatprep.subr.mxu0 0.0
    %141 = vmatpush1.msra.mxu0 0.0
    %142 = vmatprep.subr.mxu0 0.0
    %143 = vmatpush1.msra.mxu0 0.0
    %144 = vmatprep.subr.mxu0 0.0
    %145 = vmatpush1.msra.mxu0 0.0
    %146 = vmatprep.subr.mxu0 0.0
    %147 = vmatpush1.msra.mxu0 0.0
    %148 = vmatprep.subr.mxu0 0.0
    %149 = vmatpush1.msra.mxu0 0.0
    %150 = vmatprep.subr.mxu0 0.0
    %151 = vmatpush1.msra.mxu0 0.0
    %152 = vmatprep.subr.mxu0 0.0
    %153 = vmatpush1.msra.mxu0 0.0
    %154 = vmatprep.subr.mxu0 0.0
    %155 = vmatpush1.msra.mxu0 0.0
    %156 = vmatprep.subr.mxu0 0.0
    %157 = vmatpush1.msra.mxu0 0.0
    %158 = vmatprep.subr.mxu0 0.0
    %159 = vmatpush1.msra.mxu0 0.0
    %160 = vmatprep.subr.mxu0 0.0
    %161 = vmatpush1.msra.mxu0 0.0
    %162 = vmatprep.subr.mxu0 0.0
    %163 = vmatpush1.msra.mxu0 0.0
    %164 = vmatprep.subr.mxu0 0.0
    %165 = vmatpush1.msra.mxu0 0.0
    %166 = vmatprep.subr.mxu0 0.0
    %167 = vmatpush1.msra.mxu0 0.0
    %168 = vmatprep.subr.mxu0 0.0
    %169 = vmatpush1.msra.mxu0 0.0
    %170 = vmatprep.subr.mxu0 0.0
    %171 = vmatpush1.msra.mxu0 0.0
    %172 = vmatprep.mubr.f32.mxu0 0.0
    %173 = vmatmul.mubr.f32.gmra.mrb[0].mxu0 %v85
    %v174 = vpop.f32.mrb[0].mxu0
    %v175 = vadd.f32 0.0, %v174
    %v176 = vpop.f32.mrb[0].mxu0
    %177 = vmatprep.mubr.f32.mxu0 0.0
    %178 = vmatmul.mubr.f32.gmra.mrb[0].mxu0 %v88
    %v179 = vpop.f32.mrb[0].mxu0
    %v180 = vadd.f32 0.0, %v179
    %v181 = vpop.f32.mrb[0].mxu0
    %182 = vmatprep.mubr.f32.mxu0 0.0
    %183 = vmatmul.mubr.f32.gmra.mrb[0].mxu0 %v91
    %v184 = vpop.f32.mrb[0].mxu0
    %v185 = vadd.f32 0.0, %v184
    %v186 = vpop.f32.mrb[0].mxu0
    %187 = vmatprep.mubr.f32.mxu0 0.0
    %188 = vmatmul.mubr.f32.gmra.mrb[0].mxu0 %v94
    %v189 = vpop.f32.mrb[0].mxu0
    %v190 = vadd.f32 0.0, %v189
    %v191 = vpop.f32.mrb[0].mxu0
    %192 = vmatprep.mubr.f32.mxu0 0.0
    %193 = vmatmul.mubr.f32.gmra.mrb[0].mxu0 %v97
    %v194 = vpop.f32.mrb[0].mxu0
    %v195 = vadd.f32 0.0, %v194
    %v196 = vpop.f32.mrb[0].mxu0
    %197 = vmatprep.mubr.f32.mxu0 0.0
    %198 = vmatmul.mubr.f32.gmra.mrb[0].mxu0 %v100
    %v199 = vpop.f32.mrb[0].mxu0
    %v200 = vadd.f32 0.0, %v199
    %v201 = vpop.f32.mrb[0].mxu0
    %202 = vmatprep.mubr.f32.mxu0 0.0
    %203 = vmatmul.mubr.f32.gmra.mrb[0].mxu0 %v103
    %v204 = vpop.f32.mrb[0].mxu0
    %v205 = vadd.f32 0.0, %v204
    %v206 = vpop.f32.mrb[0].mxu0
    %207 = vmatprep.mubr.f32.mxu0 0.0
    %208 = vmatmul.mubr.f32.gmra.mrb[0].mxu0 %v106
    %v209 = vpop.f32.mrb[0].mxu0
    %v210 = vadd.f32 0.0, %v209
    %v211 = vpop.f32.mrb[0].mxu0
    %212 = vdwg.mxu0
    %v213 = vld [vmem:[#allocation7] sm:$0xff]
    %v214 = vld [vmem:[#allocation7 + $0x8] sm:$0xff]
    %v215 = vld [vmem:[#allocation7 + $0x10] sm:$0xff]
    %v216 = vld [vmem:[#allocation7 + $0x18] sm:$0xff]
    %217 = vmatprep.subr.mxu0 0.0
    %218 = vmatpush1.msra.mxu0 %v213
    %219 = vmatprep.subr.mxu0 0.0
    %220 = vmatpush1.msra.mxu0 %v214
    %221 = vmatprep.subr.mxu0 0.0
    %222 = vmatpush1.msra.mxu0 %v215
    %223 = vmatprep.subr.mxu0 0.0
    %224 = vmatpush1.msra.mxu0 %v216
    %225 = vmatprep.subr.mxu0 0.0
    %226 = vmatpush1.msra.mxu0 0.0
    %227 = vmatprep.subr.mxu0 0.0
    %228 = vmatpush1.msra.mxu0 0.0
    %229 = vmatprep.subr.mxu0 0.0
    %230 = vmatpush1.msra.mxu0 0.0
    %231 = vmatprep.subr.mxu0 0.0
    %232 = vmatpush1.msra.mxu0 0.0
    %233 = vmatprep.subr.mxu0 0.0
    %234 = vmatpush1.msra.mxu0 0.0
    %235 = vmatprep.subr.mxu0 0.0
    %236 = vmatpush1.msra.mxu0 0.0
    %237 = vmatprep.subr.mxu0 0.0
    %238 = vmatpush1.msra.mxu0 0.0
    %239 = vmatprep.subr.mxu0 0.0
    %240 = vmatpush1.msra.mxu0 0.0
    %241 = vmatprep.subr.mxu0 0.0
    %242 = vmatpush1.msra.mxu0 0.0
    %243 = vmatprep.subr.mxu0 0.0
    %244 = vmatpush1.msra.mxu0 0.0
    %245 = vmatprep.subr.mxu0 0.0
    %246 = vmatpush1.msra.mxu0 0.0
    %247 = vmatprep.subr.mxu0 0.0
    %248 = vmatpush1.msra.mxu0 0.0
    %249 = vmatprep.subr.mxu0 0.0
    %250 = vmatpush1.msra.mxu0 0.0
    %251 = vmatprep.subr.mxu0 0.0
    %252 = vmatpush1.msra.mxu0 0.0
    %253 = vmatprep.subr.mxu0 0.0
    %254 = vmatpush1.msra.mxu0 0.0
    %255 = vmatprep.subr.mxu0 0.0
    %256 = vmatpush1.msra.mxu0 0.0
    %257 = vmatprep.subr.mxu0 0.0
    %258 = vmatpush1.msra.mxu0 0.0
    %259 = vmatprep.subr.mxu0 0.0
    %260 = vmatpush1.msra.mxu0 0.0
    %261 = vmatprep.subr.mxu0 0.0
    %262 = vmatpush1.msra.mxu0 0.0
    %263 = vmatprep.subr.mxu0 0.0
    %264 = vmatpush1.msra.mxu0 0.0
    %265 = vmatprep.subr.mxu0 0.0
    %266 = vmatpush1.msra.mxu0 0.0
    %267 = vmatprep.subr.mxu0 0.0
    %268 = vmatpush1.msra.mxu0 0.0
    %269 = vmatprep.subr.mxu0 0.0
    %270 = vmatpush1.msra.mxu0 0.0
    %271 = vmatprep.subr.mxu0 0.0
    %272 = vmatpush1.msra.mxu0 0.0
    %273 = vmatprep.subr.mxu0 0.0
    %274 = vmatpush1.msra.mxu0 0.0
    %275 = vmatprep.subr.mxu0 0.0
    %276 = vmatpush1.msra.mxu0 0.0
    %277 = vmatprep.subr.mxu0 0.0
    %278 = vmatpush1.msra.mxu0 0.0
    %279 = vmatprep.subr.mxu0 0.0
    %280 = vmatpush1.msra.mxu0 0.0
    %281 = vmatprep.mubr.f32.mxu0 0.0
    %282 = vmatmul.mubr.f32.gmra.mrb[0].mxu0 %v85
    %v283 = vpop.f32.mrb[0].mxu0
    %v284 = vadd.f32 0.0, %v283
    %v285 = vpop.f32.mrb[0].mxu0
    %286 = vmatprep.mubr.f32.mxu0 0.0
    %287 = vmatmul.mubr.f32.gmra.mrb[0].mxu0 %v88
    %v288 = vpop.f32.mrb[0].mxu0
    %v289 = vadd.f32 0.0, %v288
    %v290 = vpop.f32.mrb[0].mxu0
    %291 = vmatprep.mubr.f32.mxu0 0.0
    %292 = vmatmul.mubr.f32.gmra.mrb[0].mxu0 %v91
    %v293 = vpop.f32.mrb[0].mxu0
    %v294 = vadd.f32 0.0, %v293
    %v295 = vpop.f32.mrb[0].mxu0
    %296 = vmatprep.mubr.f32.mxu0 0.0
    %297 = vmatmul.mubr.f32.gmra.mrb[0].mxu0 %v94
    %v298 = vpop.f32.mrb[0].mxu0
    %v299 = vadd.f32 0.0, %v298
    %v300 = vpop.f32.mrb[0].mxu0
    %301 = vmatprep.mubr.f32.mxu0 0.0
    %302 = vmatmul.mubr.f32.gmra.mrb[0].mxu0 %v97
    %v303 = vpop.f32.mrb[0].mxu0
    %v304 = vadd.f32 0.0, %v303
    %v305 = vpop.f32.mrb[0].mxu0
    %306 = vmatprep.mubr.f32.mxu0 0.0
    %307 = vmatmul.mubr.f32.gmra.mrb[0].mxu0 %v100
    %v308 = vpop.f32.mrb[0].mxu0
    %v309 = vadd.f32 0.0, %v308
    %v310 = vpop.f32.mrb[0].mxu0
    %311 = vmatprep.mubr.f32.mxu0 0.0
    %312 = vmatmul.mubr.f32.gmra.mrb[0].mxu0 %v103
    %v313 = vpop.f32.mrb[0].mxu0
    %v314 = vadd.f32 0.0, %v313
    %v315 = vpop.f32.mrb[0].mxu0
    %316 = vmatprep.mubr.f32.mxu0 0.0
    %317 = vmatmul.mubr.f32.gmra.mrb[0].mxu0 %v106
    %v318 = vpop.f32.mrb[0].mxu0
    %v319 = vadd.f32 0.0, %v318
    %v320 = vpop.f32.mrb[0].mxu0
    %321 = vdwg.mxu0
    %v322 = vld [vmem:[#allocation5] sm:$0xff]
    %v323 = vld [vmem:[#allocation5 + $0x8] sm:$0xff]
    %v324 = vld [vmem:[#allocation5 + $0x10] sm:$0xff]
    %v325 = vld [vmem:[#allocation5 + $0x18] sm:$0xff]
    %v326 = vld [vmem:[#allocation5 + $0x20] sm:$0xff]
    %v327 = vld [vmem:[#allocation5 + $0x28] sm:$0xff]
    %v328 = vld [vmem:[#allocation5 + $0x30] sm:$0xff]
    %v329 = vld [vmem:[#allocation5 + $0x38] sm:$0xff]
    %v330 = vlaneseq
    %v331 = vshrl.u32 %v330, 7
    %v332 = vadd.s32 %v331, 8
    %v333 = vlaneseq
    %v334 = vand.u32 %v333, 127
    %vm335 = vcmp.eq.s32.totalorder %v334, %v331
    %vm336 = vcmp.eq.s32.totalorder %v334, %v332
    %v337 = vsel %vm335, 1.0, 0.0
    %v338 = vsel %vm336, 1.0, 0.0
    %v339 = vadd.f32 %v337, 0.0
    %v340 = vadd.f32 %v338, 0.0
    %v341 = vadd.s32 %v331, 16
    %v342 = vadd.s32 %v332, 16
    %vm343 = vcmp.eq.s32.totalorder %v334, %v341
    %vm344 = vcmp.eq.s32.totalorder %v334, %v342
    %v345 = vsel %vm343, 1.0, 0.0
    %v346 = vsel %vm344, 1.0, 0.0
    %v347 = vadd.f32 %v339, %v345
    %v348 = vadd.f32 %v340, %v346
    %v349 = vadd.s32 %v331, 32
    %v350 = vadd.s32 %v332, 32
    %vm351 = vcmp.eq.s32.totalorder %v334, %v349
    %vm352 = vcmp.eq.s32.totalorder %v334, %v350
    %v353 = vsel %vm351, 1.0, 0.0
    %v354 = vsel %vm352, 1.0, 0.0
    %v355 = vadd.f32 %v347, %v353
    %v356 = vadd.f32 %v348, %v354
    %v357 = vadd.s32 %v331, 48
    %v358 = vadd.s32 %v332, 48
    %vm359 = vcmp.eq.s32.totalorder %v334, %v357
    %vm360 = vcmp.eq.s32.totalorder %v334, %v358
    %v361 = vsel %vm359, 1.0, 0.0
    %v362 = vsel %vm360, 1.0, 0.0
    %v363 = vadd.f32 %v355, %v361
    %v364 = vadd.f32 %v356, %v362
    %vm365 = vcmask 130048
    %v367 = vsel %vm365, %v322, 0
    %v370 = vsel %vm365, %v323, 0
    %v373 = vsel %vm365, %v324, 0
    %v376 = vsel %vm365, %v325, 0
    %v379 = vsel %vm365, %v326, 0
    %v382 = vsel %vm365, %v327, 0
    %v385 = vsel %vm365, %v328, 0
    %v388 = vsel %vm365, %v329, 0
    %390 = vmatprep.subr.mxu0 0.0
    %391 = vmatpush1.msra.mxu0 %v363
    %392 = vmatprep.subr.mxu0 0.0
    %393 = vmatpush1.msra.mxu0 %v364
    %394 = vmatprep.subr.mxu0 0.0
    %395 = vmatpush1.msra.mxu0 0.0
    %396 = vmatprep.subr.mxu0 0.0
    %397 = vmatpush1.msra.mxu0 0.0
    %398 = vmatprep.subr.mxu0 0.0
    %399 = vmatpush1.msra.mxu0 0.0
    %400 = vmatprep.subr.mxu0 0.0
    %401 = vmatpush1.msra.mxu0 0.0
    %402 = vmatprep.subr.mxu0 0.0
    %403 = vmatpush1.msra.mxu0 0.0
    %404 = vmatprep.subr.mxu0 0.0
    %405 = vmatpush1.msra.mxu0 0.0
    %406 = vmatprep.subr.mxu0 0.0
    %407 = vmatpush1.msra.mxu0 0.0
    %408 = vmatprep.subr.mxu0 0.0
    %409 = vmatpush1.msra.mxu0 0.0
    %410 = vmatprep.subr.mxu0 0.0
    %411 = vmatpush1.msra.mxu0 0.0
    %412 = vmatprep.subr.mxu0 0.0
    %413 = vmatpush1.msra.mxu0 0.0
    %414 = vmatprep.subr.mxu0 0.0
    %415 = vmatpush1.msra.mxu0 0.0
    %416 = vmatprep.subr.mxu0 0.0
    %417 = vmatpush1.msra.mxu0 0.0
    %418 = vmatprep.subr.mxu0 0.0
    %419 = vmatpush1.msra.mxu0 0.0
    %420 = vmatprep.subr.mxu0 0.0
    %421 = vmatpush1.msra.mxu0 0.0
    %422 = vmatprep.subr.mxu0 0.0
    %423 = vmatpush1.msra.mxu0 0.0
    %424 = vmatprep.subr.mxu0 0.0
    %425 = vmatpush1.msra.mxu0 0.0
    %426 = vmatprep.subr.mxu0 0.0
    %427 = vmatpush1.msra.mxu0 0.0
    %428 = vmatprep.subr.mxu0 0.0
    %429 = vmatpush1.msra.mxu0 0.0
    %430 = vmatprep.subr.mxu0 0.0
    %431 = vmatpush1.msra.mxu0 0.0
    %432 = vmatprep.subr.mxu0 0.0
    %433 = vmatpush1.msra.mxu0 0.0
    %434 = vmatprep.subr.mxu0 0.0
    %435 = vmatpush1.msra.mxu0 0.0
    %436 = vmatprep.subr.mxu0 0.0
    %437 = vmatpush1.msra.mxu0 0.0
    %438 = vmatprep.subr.mxu0 0.0
    %439 = vmatpush1.msra.mxu0 0.0
    %440 = vmatprep.subr.mxu0 0.0
    %441 = vmatpush1.msra.mxu0 0.0
    %442 = vmatprep.subr.mxu0 0.0
    %443 = vmatpush1.msra.mxu0 0.0
    %444 = vmatprep.subr.mxu0 0.0
    %445 = vmatpush1.msra.mxu0 0.0
    %446 = vmatprep.subr.mxu0 0.0
    %447 = vmatpush1.msra.mxu0 0.0
    %448 = vmatprep.subr.mxu0 0.0
    %449 = vmatpush1.msra.mxu0 0.0
    %450 = vmatprep.subr.mxu0 0.0
    %451 = vmatpush1.msra.mxu0 0.0
    %452 = vmatprep.subr.mxu0 0.0
    %453 = vmatpush1.msra.mxu0 0.0
    %454 = vmatprep.mubr.f32.mxu0 0.0
    %455 = vmatmul.mubr.f32.gmra.mrb[0].mxu0 %v367
    %v456 = vpop.f32.mrb[0].mxu0
    %v457 = vadd.f32 0.0, %v456
    %v458 = vpop.f32.mrb[0].mxu0
    %459 = vmatprep.mubr.f32.mxu0 0.0
    %460 = vmatmul.mubr.f32.gmra.mrb[0].mxu0 %v370
    %v461 = vpop.f32.mrb[0].mxu0
    %v462 = vadd.f32 0.0, %v461
    %v463 = vpop.f32.mrb[0].mxu0
    %464 = vmatprep.mubr.f32.mxu0 0.0
    %465 = vmatmul.mubr.f32.gmra.mrb[0].mxu0 %v373
    %v466 = vpop.f32.mrb[0].mxu0
    %v467 = vadd.f32 0.0, %v466
    %v468 = vpop.f32.mrb[0].mxu0
    %469 = vmatprep.mubr.f32.mxu0 0.0
    %470 = vmatmul.mubr.f32.gmra.mrb[0].mxu0 %v376
    %v471 = vpop.f32.mrb[0].mxu0
    %v472 = vadd.f32 0.0, %v471
    %v473 = vpop.f32.mrb[0].mxu0
    %474 = vmatprep.mubr.f32.mxu0 0.0
    %475 = vmatmul.mubr.f32.gmra.mrb[0].mxu0 %v379
    %v476 = vpop.f32.mrb[0].mxu0
    %v477 = vadd.f32 0.0, %v476
    %v478 = vpop.f32.mrb[0].mxu0
    %479 = vmatprep.mubr.f32.mxu0 0.0
    %480 = vmatmul.mubr.f32.gmra.mrb[0].mxu0 %v382
    %v481 = vpop.f32.mrb[0].mxu0
    %v482 = vadd.f32 0.0, %v481
    %v483 = vpop.f32.mrb[0].mxu0
    %484 = vmatprep.mubr.f32.mxu0 0.0
    %485 = vmatmul.mubr.f32.gmra.mrb[0].mxu0 %v385
    %v486 = vpop.f32.mrb[0].mxu0
    %v487 = vadd.f32 0.0, %v486
    %v488 = vpop.f32.mrb[0].mxu0
    %489 = vmatprep.mubr.f32.mxu0 0.0
    %490 = vmatmul.mubr.f32.gmra.mrb[0].mxu0 %v388
    %v491 = vpop.f32.mrb[0].mxu0
    %v492 = vadd.f32 0.0, %v491
    %v493 = vpop.f32.mrb[0].mxu0
    %494 = vdwg.mxu0
    %v495 = vadd.s32 %v331, 24
    %v496 = vadd.s32 %v331, 40
    %v497 = vadd.s32 %v331, 56
    %vm498 = vcmp.ge.s32.totalorder %v331, 16
    %vm499 = vcmp.ge.s32.totalorder %v332, 16
    %vm500 = vcmp.ge.s32.totalorder %v341, 16
    %vm501 = vcmp.ge.s32.totalorder %v495, 16
    %vm502 = vcmp.ge.s32.totalorder %v349, 16
    %vm503 = vcmp.ge.s32.totalorder %v496, 16
    %vm504 = vcmp.ge.s32.totalorder %v357, 16
    %vm505 = vcmp.ge.s32.totalorder %v497, 16
    %v506 = vsel %vm498, 1, 0
    %v507 = vsel %vm499, 1, 0
    %v508 = vsel %vm500, 1, 0
    %v509 = vsel %vm501, 1, 0
    %v510 = vsel %vm502, 1, 0
    %v511 = vsel %vm503, 1, 0
    %v512 = vsel %vm504, 1, 0
    %v513 = vsel %vm505, 1, 0
    %vm514 = vcmp.ge.s32.totalorder %v334, 16
    %v515 = vsel %vm514, 1, 0
    %vm516 = vcmp.ge.s32.totalorder %v331, 32
    %vm517 = vcmp.ge.s32.totalorder %v332, 32
    %vm518 = vcmp.ge.s32.totalorder %v341, 32
    %vm519 = vcmp.ge.s32.totalorder %v495, 32
    %vm520 = vcmp.ge.s32.totalorder %v349, 32
    %vm521 = vcmp.ge.s32.totalorder %v496, 32
    %vm522 = vcmp.ge.s32.totalorder %v357, 32
    %vm523 = vcmp.ge.s32.totalorder %v497, 32
    %v524 = vsel %vm516, 1, 0
    %v525 = vsel %vm517, 1, 0
    %v526 = vsel %vm518, 1, 0
    %v527 = vsel %vm519, 1, 0
    %v528 = vsel %vm520, 1, 0
    %v529 = vsel %vm521, 1, 0
    %v530 = vsel %vm522, 1, 0
    %v531 = vsel %vm523, 1, 0
    %v532 = vadd.s32 %v506, %v524
    %v533 = vadd.s32 %v507, %v525
    %v534 = vadd.s32 %v508, %v526
    %v535 = vadd.s32 %v509, %v527
    %v536 = vadd.s32 %v510, %v528
    %v537 = vadd.s32 %v511, %v529
    %v538 = vadd.s32 %v512, %v530
    %v539 = vadd.s32 %v513, %v531
    %vm540 = vcmp.ge.s32.totalorder %v334, 32
    %v541 = vsel %vm540, 1, 0
    %v542 = vadd.s32 %v515, %v541
    %vm543 = vcmp.ge.s32.totalorder %v331, 48
    %vm544 = vcmp.ge.s32.totalorder %v332, 48
    %vm545 = vcmp.ge.s32.totalorder %v341, 48
    %vm546 = vcmp.ge.s32.totalorder %v495, 48
    %vm547 = vcmp.ge.s32.totalorder %v349, 48
    %vm548 = vcmp.ge.s32.totalorder %v496, 48
    %vm549 = vcmp.ge.s32.totalorder %v357, 48
    %vm550 = vcmp.ge.s32.totalorder %v497, 48
    %v551 = vsel %vm543, 1, 0
    %v552 = vsel %vm544, 1, 0
    %v553 = vsel %vm545, 1, 0
    %v554 = vsel %vm546, 1, 0
    %v555 = vsel %vm547, 1, 0
    %v556 = vsel %vm548, 1, 0
    %v557 = vsel %vm549, 1, 0
    %v558 = vsel %vm550, 1, 0
    %v559 = vadd.s32 %v532, %v551
    %v560 = vadd.s32 %v533, %v552
    %v561 = vadd.s32 %v534, %v553
    %v562 = vadd.s32 %v535, %v554
    %v563 = vadd.s32 %v536, %v555
    %v564 = vadd.s32 %v537, %v556
    %v565 = vadd.s32 %v538, %v557
    %v566 = vadd.s32 %v539, %v558
    %vm567 = vcmp.ge.s32.totalorder %v334, 48
    %v568 = vsel %vm567, 1, 0
    %v569 = vadd.s32 %v542, %v568
    %vm570 = vcmp.eq.s32.totalorder %v559, %v569
    %vm571 = vcmp.eq.s32.totalorder %v560, %v569
    %vm572 = vcmp.eq.s32.totalorder %v561, %v569
    %vm573 = vcmp.eq.s32.totalorder %v562, %v569
    %vm574 = vcmp.eq.s32.totalorder %v563, %v569
    %vm575 = vcmp.eq.s32.totalorder %v564, %v569
    %vm576 = vcmp.eq.s32.totalorder %v565, %v569
    %vm577 = vcmp.eq.s32.totalorder %v566, %v569
    %v578 = vsel %vm570, %v457, 0.0
    %v579 = vsel %vm571, %v462, 0.0
    %v580 = vsel %vm572, %v467, 0.0
    %v581 = vsel %vm573, %v472, 0.0
    %v582 = vsel %vm574, %v477, 0.0
    %v583 = vsel %vm575, %v482, 0.0
    %v584 = vsel %vm576, %v487, 0.0
    %v585 = vsel %vm577, %v492, 0.0
    %vm586 = vcmask 523264
    %v588 = vsel %vm586, %v578, 0
    %v591 = vsel %vm586, %v579, 0
    %v594 = vsel %vm586, %v580, 0
    %v597 = vsel %vm586, %v581, 0
    %v600 = vsel %vm586, %v582, 0
    %v603 = vsel %vm586, %v583, 0
    %v606 = vsel %vm586, %v584, 0
    %v609 = vsel %vm586, %v585, 0
    %611 = vmatprep.subr.mxu0 0.0
    %612 = vmatpush1.msra.mxu0 %v175
    %613 = vmatprep.subr.mxu0 0.0
    %614 = vmatpush1.msra.mxu0 %v180
    %615 = vmatprep.subr.mxu0 0.0
    %616 = vmatpush1.msra.mxu0 %v185
    %617 = vmatprep.subr.mxu0 0.0
    %618 = vmatpush1.msra.mxu0 %v190
    %619 = vmatprep.subr.mxu0 0.0
    %620 = vmatpush1.msra.mxu0 %v195
    %621 = vmatprep.subr.mxu0 0.0
    %622 = vmatpush1.msra.mxu0 %v200
    %623 = vmatprep.subr.mxu0 0.0
    %624 = vmatpush1.msra.mxu0 %v205
    %625 = vmatprep.subr.mxu0 0.0
    %626 = vmatpush1.msra.mxu0 %v210
    %627 = vmatprep.subr.mxu0 0.0
    %628 = vmatpush1.msra.mxu0 0.0
    %629 = vmatprep.subr.mxu0 0.0
    %630 = vmatpush1.msra.mxu0 0.0
    %631 = vmatprep.subr.mxu0 0.0
    %632 = vmatpush1.msra.mxu0 0.0
    %633 = vmatprep.subr.mxu0 0.0
    %634 = vmatpush1.msra.mxu0 0.0
    %635 = vmatprep.subr.mxu0 0.0
    %636 = vmatpush1.msra.mxu0 0.0
    %637 = vmatprep.subr.mxu0 0.0
    %638 = vmatpush1.msra.mxu0 0.0
    %639 = vmatprep.subr.mxu0 0.0
    %640 = vmatpush1.msra.mxu0 0.0
    %641 = vmatprep.subr.mxu0 0.0
    %642 = vmatpush1.msra.mxu0 0.0
    %643 = vmatprep.subr.mxu0 0.0
    %644 = vmatpush1.msra.mxu0 0.0
    %645 = vmatprep.subr.mxu0 0.0
    %646 = vmatpush1.msra.mxu0 0.0
    %647 = vmatprep.subr.mxu0 0.0
    %648 = vmatpush1.msra.mxu0 0.0
    %649 = vmatprep.subr.mxu0 0.0
    %650 = vmatpush1.msra.mxu0 0.0
    %651 = vmatprep.subr.mxu0 0.0
    %652 = vmatpush1.msra.mxu0 0.0
    %653 = vmatprep.subr.mxu0 0.0
    %654 = vmatpush1.msra.mxu0 0.0
    %655 = vmatprep.subr.mxu0 0.0
    %656 = vmatpush1.msra.mxu0 0.0
    %657 = vmatprep.subr.mxu0 0.0
    %658 = vmatpush1.msra.mxu0 0.0
    %659 = vmatprep.subr.mxu0 0.0
    %660 = vmatpush1.msra.mxu0 0.0
    %661 = vmatprep.subr.mxu0 0.0
    %662 = vmatpush1.msra.mxu0 0.0
    %663 = vmatprep.subr.mxu0 0.0
    %664 = vmatpush1.msra.mxu0 0.0
    %665 = vmatprep.subr.mxu0 0.0
    %666 = vmatpush1.msra.mxu0 0.0
    %667 = vmatprep.subr.mxu0 0.0
    %668 = vmatpush1.msra.mxu0 0.0
    %669 = vmatprep.subr.mxu0 0.0
    %670 = vmatpush1.msra.mxu0 0.0
    %671 = vmatprep.subr.mxu0 0.0
    %672 = vmatpush1.msra.mxu0 0.0
    %673 = vmatprep.subr.mxu0 0.0
    %674 = vmatpush1.msra.mxu0 0.0
    %675 = vmatprep.mubr.f32.mxu0 0.0
    %676 = vmatmul.mubr.f32.gmra.mrb[0].mxu0 %v588
    %v677 = vpop.f32.mrb[0].mxu0
    %v678 = vadd.f32 %v284, %v677
    %v679 = vpop.f32.mrb[0].mxu0
    %680 = vmatprep.mubr.f32.mxu0 0.0
    %681 = vmatmul.mubr.f32.gmra.mrb[0].mxu0 %v591
    %v682 = vpop.f32.mrb[0].mxu0
    %v683 = vadd.f32 %v289, %v682
    %v684 = vpop.f32.mrb[0].mxu0
    %685 = vmatprep.mubr.f32.mxu0 0.0
    %686 = vmatmul.mubr.f32.gmra.mrb[0].mxu0 %v594
    %v687 = vpop.f32.mrb[0].mxu0
    %v688 = vadd.f32 %v294, %v687
    %v689 = vpop.f32.mrb[0].mxu0
    %690 = vmatprep.mubr.f32.mxu0 0.0
    %691 = vmatmul.mubr.f32.gmra.mrb[0].mxu0 %v597
    %v692 = vpop.f32.mrb[0].mxu0
    %v693 = vadd.f32 %v299, %v692
    %v694 = vpop.f32.mrb[0].mxu0
    %695 = vmatprep.mubr.f32.mxu0 0.0
    %696 = vmatmul.mubr.f32.gmra.mrb[0].mxu0 %v600
    %v697 = vpop.f32.mrb[0].mxu0
    %v698 = vadd.f32 %v304, %v697
    %v699 = vpop.f32.mrb[0].mxu0
    %700 = vmatprep.mubr.f32.mxu0 0.0
    %701 = vmatmul.mubr.f32.gmra.mrb[0].mxu0 %v603
    %v702 = vpop.f32.mrb[0].mxu0
    %v703 = vadd.f32 %v309, %v702
    %v704 = vpop.f32.mrb[0].mxu0
    %705 = vmatprep.mubr.f32.mxu0 0.0
    %706 = vmatmul.mubr.f32.gmra.mrb[0].mxu0 %v606
    %v707 = vpop.f32.mrb[0].mxu0
    %v708 = vadd.f32 %v314, %v707
    %v709 = vpop.f32.mrb[0].mxu0
    %710 = vmatprep.mubr.f32.mxu0 0.0
    %711 = vmatmul.mubr.f32.gmra.mrb[0].mxu0 %v609
    %v712 = vpop.f32.mrb[0].mxu0
    %v713 = vadd.f32 %v319, %v712
    %v714 = vpop.f32.mrb[0].mxu0
    %715 = vdwg.mxu0
    %v716 = vld [vmem:[%s5] sm:$0x1]
    %v718 = vlaneseq
    %v719 = vshrl.u32 %v718, 7
    %v720 = vsub.s32 0, %v719
    %v721 = vrot.slane %v716, %v720
    %v723 = vadd.f32 %v678, %v721
    %v724 = vadd.f32 %v683, %v721
    %v725 = vadd.f32 %v688, %v721
    %v726 = vadd.f32 %v693, %v721
    %v727 = vadd.f32 %v698, %v721
    %v728 = vadd.f32 %v703, %v721
    %v729 = vadd.f32 %v708, %v721
    %v730 = vadd.f32 %v713, %v721
    %v731 = vmax.f32 %v723, 0.0
    %v732 = vmax.f32 %v724, 0.0
    %v733 = vmax.f32 %v725, 0.0
    %v734 = vmax.f32 %v726, 0.0
    %v735 = vmax.f32 %v727, 0.0
    %v736 = vmax.f32 %v728, 0.0
    %v737 = vmax.f32 %v729, 0.0
    %v738 = vmax.f32 %v730, 0.0
    %v739 = vmul.u32 %v331, 16
    %vm740 = vcmp.ge.s32.totalorder %v334, %v739
    %v741 = vld [vmem:[%s0] sm:$0xf]
    %742 = vset.pattern.permute.xlu0 0
    %743 = vperm.xlu0 %742, %v741
    %v744 = vpop.permute.xlu0 %743
    %v745 = vadd.s32 %v739, %v744
    %vm746 = vcmp.lt.s32.totalorder %v334, %v745
    %vm747 = vmand %vm740, %vm746
    %v748 = vsel %vm747, 1.0, 0.0
    %v750 = vsel %vm586, %v748, 0
    %752 = vmatprep.subr.mxu0 0.0
    %753 = vmatpush1.msra.mxu0 %v731
    %754 = vmatprep.subr.mxu0 0.0
    %755 = vmatpush1.msra.mxu0 %v732
    %756 = vmatprep.subr.mxu0 0.0
    %757 = vmatpush1.msra.mxu0 %v733
    %758 = vmatprep.subr.mxu0 0.0
    %759 = vmatpush1.msra.mxu0 %v734
    %760 = vmatprep.subr.mxu0 0.0
    %761 = vmatpush1.msra.mxu0 %v735
    %762 = vmatprep.subr.mxu0 0.0
    %763 = vmatpush1.msra.mxu0 %v736
    %764 = vmatprep.subr.mxu0 0.0
    %765 = vmatpush1.msra.mxu0 %v737
    %766 = vmatprep.subr.mxu0 0.0
    %767 = vmatpush1.msra.mxu0 %v738
    %768 = vmatprep.subr.mxu0 0.0
    %769 = vmatpush1.msra.mxu0 0.0
    %770 = vmatprep.subr.mxu0 0.0
    %771 = vmatpush1.msra.mxu0 0.0
    %772 = vmatprep.subr.mxu0 0.0
    %773 = vmatpush1.msra.mxu0 0.0
    %774 = vmatprep.subr.mxu0 0.0
    %775 = vmatpush1.msra.mxu0 0.0
    %776 = vmatprep.subr.mxu0 0.0
    %777 = vmatpush1.msra.mxu0 0.0
    %778 = vmatprep.subr.mxu0 0.0
    %779 = vmatpush1.msra.mxu0 0.0
    %780 = vmatprep.subr.mxu0 0.0
    %781 = vmatpush1.msra.mxu0 0.0
    %782 = vmatprep.subr.mxu0 0.0
    %783 = vmatpush1.msra.mxu0 0.0
    %784 = vmatprep.subr.mxu0 0.0
    %785 = vmatpush1.msra.mxu0 0.0
    %786 = vmatprep.subr.mxu0 0.0
    %787 = vmatpush1.msra.mxu0 0.0
    %788 = vmatprep.subr.mxu0 0.0
    %789 = vmatpush1.msra.mxu0 0.0
    %790 = vmatprep.subr.mxu0 0.0
    %791 = vmatpush1.msra.mxu0 0.0
    %792 = vmatprep.subr.mxu0 0.0
    %793 = vmatpush1.msra.mxu0 0.0
    %794 = vmatprep.subr.mxu0 0.0
    %795 = vmatpush1.msra.mxu0 0.0
    %796 = vmatprep.subr.mxu0 0.0
    %797 = vmatpush1.msra.mxu0 0.0
    %798 = vmatprep.subr.mxu0 0.0
    %799 = vmatpush1.msra.mxu0 0.0
    %800 = vmatprep.subr.mxu0 0.0
    %801 = vmatpush1.msra.mxu0 0.0
    %802 = vmatprep.subr.mxu0 0.0
    %803 = vmatpush1.msra.mxu0 0.0
    %804 = vmatprep.subr.mxu0 0.0
    %805 = vmatpush1.msra.mxu0 0.0
    %806 = vmatprep.subr.mxu0 0.0
    %807 = vmatpush1.msra.mxu0 0.0
    %808 = vmatprep.subr.mxu0 0.0
    %809 = vmatpush1.msra.mxu0 0.0
    %810 = vmatprep.subr.mxu0 0.0
    %811 = vmatpush1.msra.mxu0 0.0
    %812 = vmatprep.subr.mxu0 0.0
    %813 = vmatpush1.msra.mxu0 0.0
    %814 = vmatprep.subr.mxu0 0.0
    %815 = vmatpush1.msra.mxu0 0.0
    %816 = vmatprep.mubr.f32.mxu0 0.0
    %817 = vmatmul.mubr.f32.gmra.mrb[0].mxu0 %v750
    %v818 = vpop.f32.mrb[0].mxu0
    %v819 = vadd.f32 0.0, %v818
    %v820 = vpop.f32.mrb[0].mxu0
    %821 = vdwg.mxu0
    %v823 = vrot.slane %v819, 2
    %v825 = vmul.f32 %v819, %v823
    %v826 = vld [vmem:[%s6] sm:$0x1]
    %v828 = vlaneseq
    %v829 = vshrl.u32 %v828, 7
    %v830 = vsub.s32 0, %v829
    %v831 = vrot.slane %v826, %v830
    %v833 = vmul.f32 %v825, %v831
    %vm834 = vcmask 254976
    %v835 = vsel %vm834, %v833, 0.0
    %836 = vadd.xlane.f32.xlu0 %v835
    %v837 = vpop.xlane.xlu0 %836
    %s838 = sld [smem:[#allocation2]]
    %v839 = vstv %s838
    %v840 = vadd.f32 %v837, %v839
    %vm841 = vcmask 1024
    %842 = vst.msk [vmem:[%s8] sm:$0x3] %vm841, %v840
    // Predicated region
    $region46: #{encode_then_interact_forward.1} parent=1 // pred_check
      _
    $region47: #{encode_then_interact_forward.1} parent=1 // pred_check_branch
      %844 = sbr.rel (0) target = $region49
    $region48: #{encode_then_interact_forward.1} parent=1 // pred_region
      _
    $region49: #{encode_then_interact_forward.1} parent=1 // pred_fallthru
      _
    // Predicated region
    $region50: #{encode_then_interact_forward.1} parent=1 // pred_check
      _
    $region51: #{encode_then_interact_forward.1} parent=1 // pred_check_branch
      %846 = sbr.rel (0) target = $region53
    $region52: #{encode_then_interact_forward.1} parent=1 // pred_region
      _
    $region53: #{encode_then_interact_forward.1} parent=1 // pred_fallthru
      _
    %847 = vsyncpa [#allocation4], 1
    %848 = vsyncpa [#allocation6], 1

</llo_original>
